<compile_context>
chip_gen: v7x
topology: tpu7x:2x2x1
jax: 0.10.0
libtpu: 0.0.40
codegen_flags: <defaults>
</compile_context>

<pallas_src>
import jax
import jax.numpy as jnp
from jax import lax
from jax.experimental import pallas as pl
from jax.experimental.pallas import tpu as pltpu

_SUBLANE = 8
_MAX_TK = 4096          # cap on the feature tile (multiple of 128)


def _make_linear_kernel(d_total: int, tk: int):
    """Build kernel body; mask code only emitted when the K tiling is ragged."""
    ragged_k = (d_total % tk) != 0

    def kernel(x_ref, w_ref, b_ref, o_ref, acc_ref):
        # x_ref: (TB, TK) x.dtype; w_ref: (1, TK) f32; b_ref: (1,) f32 in SMEM
        # o_ref: (TB, 1) f32; acc_ref: (TB, 1) f32 VMEM scratch
        k = pl.program_id(1)

        @pl.when(k == 0)
        def _init():
            acc_ref[...] = jnp.zeros_like(acc_ref)

        x = x_ref[...]
        w = w_ref[...]
        if ragged_k:
            # Last K tile sticks out past D: zero the out-of-range features so
            # uninitialized VMEM past the array edge can't pollute the sum.
            valid = d_total - k * tk          # >= TK on every non-last tile
            col_x = lax.broadcasted_iota(jnp.int32, x.shape, 1)
            x = jnp.where(col_x < valid, x, 0.0)
            col_w = lax.broadcasted_iota(jnp.int32, w.shape, 1)
            w = jnp.where(col_w < valid, w, 0.0)

        # (TB, TK) contracted with (1, TK) over the feature dim -> (TB, 1).
        # x sits in the canonical (M, K) slot -> no transpose of the big tile.
        acc_ref[...] += lax.dot_general(
            x, w,
            dimension_numbers=(((1,), (1,)), ((), ())),
            preferred_element_type=jnp.float32,
        )

        @pl.when(k == pl.num_programs(1) - 1)
        def _finalize():
            o_ref[...] = (acc_ref[...] + b_ref[0]).astype(o_ref.dtype)

    return kernel


def _choose_tiles(batch: int, d: int, itemsize: int, target_block_bytes: int):
    # Feature tile: full D when modest, else a 128-multiple so the K grid axis
    # bounds per-block bytes independently of D.
    tk = d if d <= _MAX_TK else _MAX_TK
    # Batch tile from the per-block byte budget (Pallas double-buffers it).
    rows = max(target_block_bytes // (tk * itemsize), _SUBLANE)
    if rows >= batch:
        tb = batch                                  # full dim is always legal
    else:
        tb = max((rows // _SUBLANE) * _SUBLANE, _SUBLANE)
    return int(tb), int(tk)


def linear_regression_forward(x, weight, bias, *,
                              target_block_bytes=4 << 20,
                              min_pallas_bytes=256 << 10):
    """Forward of nn.Linear(input_dim, 1).

    x: (B, D); weight: (1, D) (PyTorch layout); bias: (1,). Returns (B, 1) f32.
    """
    batch, d = x.shape
    w_row = weight.reshape(1, d).astype(jnp.float32)
    b_vec = bias.reshape(1).astype(jnp.float32)

    # Tiny problems: a fused XLA dot beats any pallas_call (launch overhead).
    if x.size * x.dtype.itemsize < min_pallas_bytes:
        return (x @ w_row.T + b_vec).astype(jnp.float32).reshape(batch, 1)

    tb, tk = _choose_tiles(batch, d, x.dtype.itemsize, target_block_bytes)
    grid = (pl.cdiv(batch, tb), pl.cdiv(d, tk))

    cost = pl.CostEstimate(
        flops=2 * batch * d,
        transcendentals=0,
        bytes_accessed=(batch * d * x.dtype.itemsize   # x, streamed as stored
                        + d * 4 + 4                    # weight + bias
                        + batch * 4),                  # output
    )

    return pl.pallas_call(
        _make_linear_kernel(d, tk),
        out_shape=jax.ShapeDtypeStruct((batch, 1), jnp.float32),
        grid_spec=pltpu.PrefetchScalarGridSpec(
            num_scalar_prefetch=0,
            grid=grid,
            in_specs=[
                pl.BlockSpec((tb, tk), lambda i, k: (i, k)),        # x, streamed
                pl.BlockSpec((1, tk), lambda i, k: (0, k)),         # weight
                pl.BlockSpec(memory_space=pltpu.MemorySpace.SMEM),  # bias scalar
            ],
            out_specs=pl.BlockSpec((tb, 1), lambda i, k: (i, 0)),
            scratch_shapes=[pltpu.VMEM((tb, 1), jnp.float32)],      # f32 accumulator
        ),
        compiler_params=pltpu.CompilerParams(
            dimension_semantics=("parallel", "arbitrary"),
            vmem_limit_bytes=32 * 1024 * 1024,
        ),
        cost_estimate=cost,
    )(x, w_row, b_vec)


if __name__ == "__main__":
    key = jax.random.PRNGKey(0)
    kx, kw, kb = jax.random.split(key, 3)

    # Shapes implied by the module: x (batch, input_dim) -> (batch, 1).
    batch, input_dim = 8, 32
    x = jax.random.normal(kx, (batch, input_dim), dtype=jnp.float32)
    bound = 1.0 / (input_dim ** 0.5)   # nn.Linear's default uniform init range
    weight = jax.random.uniform(kw, (1, input_dim), jnp.float32, -bound, bound)
    bias = jax.random.uniform(kb, (1,), jnp.float32, -bound, bound)

    # Force the Pallas path even at this toy size so the kernel is exercised.
    out = linear_regression_forward(x, weight, bias, min_pallas_bytes=0)
    out = jax.block_until_ready(out)

    ref = jnp.matmul(x, weight.T, precision=jax.lax.Precision.HIGHEST) + bias
    assert out.shape == (batch, 1)
    assert jnp.allclose(out, ref, atol=2e-2, rtol=2e-2), \
        float(jnp.max(jnp.abs(out - ref)))

    # Second check: exercises multi-tile batch axis, K-splitting and both
    # ragged edges (last batch tile + masked last K tile).
    b2, d2 = 520, 4200
    k2x, k2w, k2b = jax.random.split(jax.random.PRNGKey(1), 3)
    x2 = jax.random.normal(k2x, (b2, d2), dtype=jnp.float32)
    bound2 = 1.0 / (d2 ** 0.5)
    w2 = jax.random.uniform(k2w, (1, d2), jnp.float32, -bound2, bound2)
    bias2 = jax.random.uniform(k2b, (1,), jnp.float32, -bound2, bound2)
    out2 = jax.block_until_ready(linear_regression_forward(x2, w2, bias2))
    ref2 = jnp.matmul(x2, w2.T, precision=jax.lax.Precision.HIGHEST) + bias2
    assert out2.shape == (b2, 1)
    assert jnp.allclose(out2, ref2, atol=3e-2, rtol=3e-2), \
        float(jnp.max(jnp.abs(out2 - ref2)))

    print("KERNEL_OK")
</pallas_src>

<mosaic_0001>
module attributes {stable_mosaic.version = 11 : i64} {
  func.func @kernel(%arg0: i32, %arg1: i32, %arg2: memref<8x32xf32, #tpu.memory_space<vmem>>, %arg3: memref<1x32xf32, #tpu.memory_space<vmem>>, %arg4: memref<1xf32, #tpu.memory_space<smem>>, %arg5: memref<8x1xf32, #tpu.memory_space<vmem>>, %arg6: memref<8x1xf32, #tpu.memory_space<vmem>>) attributes {dimension_semantics = [#tpu.dimension_semantics<parallel>, #tpu.dimension_semantics<arbitrary>], iteration_bounds = array<i64: 1, 1>, scalar_prefetch = 0 : i64, scratch_operands = 1 : i64, tpu.core_type = #tpu.core_type<tc>, window_params = [{transform_indices = @transform_0, window_bounds = array<i64: 8, 32>}, {transform_indices = @transform_1, window_bounds = array<i64: 1, 32>}, {transform_indices = @transform_2, window_bounds = array<i64: 1>}, {transform_indices = @transform_3, window_bounds = array<i64: 8, 1>}]} {
    %c0_i32 = arith.constant 0 : i32
    %0 = arith.cmpi eq, %arg1, %c0_i32 : i32
    %1 = arith.extui %0 : i1 to i32
    %c0_i32_0 = arith.constant 0 : i32
    %2 = arith.cmpi ne, %1, %c0_i32_0 : i32
    scf.if %2 {
      %cst_10 = arith.constant 0.000000e+00 : f32
      %12 = vector.broadcast %cst_10 : f32 to vector<8x1xf32>
      %c0_11 = arith.constant 0 : index
      %c0_12 = arith.constant 0 : index
      %13 = vector.load %arg6[%c0_11, %c0_12] : memref<8x1xf32, #tpu.memory_space<vmem>>, vector<8x1xf32>
      tpu.vector_store %arg6[%c0_11, %c0_12], %12 {strides = array<i32>} : memref<8x1xf32, #tpu.memory_space<vmem>>, vector<8x1xf32>,
    } else {
    }
    %c0 = arith.constant 0 : index
    %c0_1 = arith.constant 0 : index
    %3 = vector.load %arg2[%c0, %c0_1] : memref<8x32xf32, #tpu.memory_space<vmem>>, vector<8x32xf32>
    %c0_2 = arith.constant 0 : index
    %c0_3 = arith.constant 0 : index
    %4 = vector.load %arg3[%c0_2, %c0_3] : memref<1x32xf32, #tpu.memory_space<vmem>>, vector<1x32xf32>
    %c0_4 = arith.constant 0 : index
    %c0_5 = arith.constant 0 : index
    %5 = vector.load %arg6[%c0_4, %c0_5] : memref<8x1xf32, #tpu.memory_space<vmem>>, vector<8x1xf32>
    %cst = arith.constant dense<0.000000e+00> : vector<8x1xf32>
    %6 = tpu.matmul %3, %4, %cst {dimension_numbers = #tpu.dot_dimension_numbers<[1], [1], [0], [0], [0, 0, 1, 0], [], []>} : vector<8x32xf32>, vector<1x32xf32>, vector<8x1xf32> -> vector<8x1xf32>
    %7 = arith.addf %5, %6 : vector<8x1xf32>
    %c0_6 = arith.constant 0 : index
    %c0_7 = arith.constant 0 : index
    %8 = vector.load %arg6[%c0_6, %c0_7] : memref<8x1xf32, #tpu.memory_space<vmem>>, vector<8x1xf32>
    tpu.vector_store %arg6[%c0_6, %c0_7], %7 {strides = array<i32>} : memref<8x1xf32, #tpu.memory_space<vmem>>, vector<8x1xf32>,
    %c0_i32_8 = arith.constant 0 : i32
    %9 = arith.cmpi eq, %arg1, %c0_i32_8 : i32
    %10 = arith.extui %9 : i1 to i32
    %c0_i32_9 = arith.constant 0 : i32
    %11 = arith.cmpi ne, %10, %c0_i32_9 : i32
    scf.if %11 {
      %c0_10 = arith.constant 0 : index
      %c0_11 = arith.constant 0 : index
      %12 = vector.load %arg6[%c0_10, %c0_11] : memref<8x1xf32, #tpu.memory_space<vmem>>, vector<8x1xf32>
      %c0_12 = arith.constant 0 : index
      %13 = memref.load %arg4[%c0_12] : memref<1xf32, #tpu.memory_space<smem>>
      %14 = vector.broadcast %13 : f32 to vector<8x1xf32>
      %15 = arith.addf %12, %14 : vector<8x1xf32>
      %c0_13 = arith.constant 0 : index
      %c0_14 = arith.constant 0 : index
      %16 = vector.load %arg5[%c0_13, %c0_14] : memref<8x1xf32, #tpu.memory_space<vmem>>, vector<8x1xf32>
      tpu.vector_store %arg5[%c0_13, %c0_14], %15 {strides = array<i32>} : memref<8x1xf32, #tpu.memory_space<vmem>>, vector<8x1xf32>,
    } else {
    }
    return
  }
  func.func @transform_0(%arg0: i32, %arg1: i32) -> (i32, i32) {
    %c0_i32 = arith.constant 0 : i32
    return %arg0, %arg1 : i32, i32
  }
  func.func @transform_1(%arg0: i32, %arg1: i32) -> (i32, i32) {
    %c0_i32 = arith.constant 0 : i32
    %c0_i32_0 = arith.constant 0 : i32
    return %c0_i32, %arg1 : i32, i32
  }
  func.func @transform_2(%arg0: i32, %arg1: i32) -> i32 {
    %c0_i32 = arith.constant 0 : i32
    %c0_i32_0 = arith.constant 0 : i32
    return %c0_i32 : i32
  }
  func.func @transform_3(%arg0: i32, %arg1: i32) -> (i32, i32) {
    %c0_i32 = arith.constant 0 : i32
    %c0_i32_0 = arith.constant 0 : i32
    return %arg0, %c0_i32 : i32, i32
  }
}

</mosaic_0001>

<llo_original>
// kernel: tpu_custom_call.1
$region0: #{tpu_custom_call.1}
  #allocation0 [shape = 'u32[]', space=smem, size = 0x4, offset = 0x4, fixed_abs, tag = 'smem constant byte address 0x4 - core index']
  #allocation1 [shape = 'u32[144,128]{1,0:T(1,128)}', space=vmem, size = 0x12000, scoped, tag = 'internal scratch']
  #allocation2 [shape = 'f32[8,1]{1,0:T(8,128)}', space=vmem, size = 0x1000, scoped, tag = 'scratch operand']
  #allocation3 [shape = 'f32[1]{0:T(128)S(6)}', space=smem, size = 0x200, scoped, tag = 'scoped memory for tpu_custom_call.1']
  %s0 = inlined_call_operand.hbm [shape: f32[8,32], index: 0, kind: input, shape index: {}]
  %s1 = inlined_call_operand.vmem [shape: f32[1,32], index: 1, kind: input, shape index: {}]
  %s2 = inlined_call_operand.<no memory space> [shape: f32[1], index: 2, kind: input, shape index: {}]
  %s3 = inlined_call_operand.vmem [shape: f32[8,1], index: 3, kind: output, shape index: {}]
  %s4 = sld [smem:[#allocation0]]
  $region34: #{tpu_custom_call.1} parent=0
    _
  %s6 = ssub.s32 1, %s4
  %s7 = scalar_select 0, %s6, %s4
  %8 = sst [smem:[#allocation3]] %s2
  $region1: #{tpu_custom_call.1} parent=0
    #allocation4 [shape = 'u8[4096]{0}', space=vmem, size = 0x1000, scoped, tag = 'input window, operand 0, single buffered']
    #allocation5 [shape = 's32[1]{0}', space=sflag, size = 0x4, scoped, tag = 'scoped memory for tpu_custom_call.1']
    %9 = vsyncpa [#allocation5], 0
    // Predicated region
    $region2: #{tpu_custom_call.1} parent=1 // pred_check
      _
    $region3: #{tpu_custom_call.1} parent=1 // pred_check_branch
      %11 = sbr.rel (0) target = $region5
    $region4: #{tpu_custom_call.1} parent=1 // pred_region
      %s13 = ssub.s32 128, 128
      %14 = vsyncadd [#allocation5], %s13
      %s16 = sshll.u32 [#allocation4], 4
      %s17 = int_to_ptr.vmem [resolvable:$true] %s16
      %19 = dma.hbm_to_vmem [thread:$0]  %s0, 128, %s17, [#allocation5]
    $region5: #{tpu_custom_call.1} parent=1 // pred_fallthru
      _
    // Predicated region
    $region6: #{tpu_custom_call.1} parent=1 // pred_check
      _
    $region7: #{tpu_custom_call.1} parent=1 // pred_check_branch
      %21 = sbr.rel (0) target = $region9
    $region8: #{tpu_custom_call.1} parent=1 // pred_region
      _
    $region9: #{tpu_custom_call.1} parent=1 // pred_fallthru
      _
    // Predicated region
    $region10: #{tpu_custom_call.1} parent=1 // pred_check
      _
    $region11: #{tpu_custom_call.1} parent=1 // pred_check_branch
      %23 = sbr.rel (0) target = $region13
    $region12: #{tpu_custom_call.1} parent=1 // pred_region
      _
    $region13: #{tpu_custom_call.1} parent=1 // pred_fallthru
      _
    // Predicated region
    $region14: #{tpu_custom_call.1} parent=1 // pred_check
      _
    $region15: #{tpu_custom_call.1} parent=1 // pred_check_branch
      %25 = sbr.rel (0) target = $region17
    $region16: #{tpu_custom_call.1} parent=1 // pred_region
      %26 = dma.done [#allocation5], 128
    $region17: #{tpu_custom_call.1} parent=1 // pred_fallthru
      _
    %p27 = scmp.eq.s32.totalorder 0, 0
    // Predicated region
    $region18: #{tpu_custom_call.1} parent=1 // pred_check
      %p28 = pneg %p27
    $region19: #{tpu_custom_call.1} parent=1 // pred_check_branch
      %30 = sbr.rel (%p28) target = $region21
    $region20: #{tpu_custom_call.1} parent=1 // pred_region
      %vm31 = vcmask 7168
      %32 = vst.msk [vmem:[#allocation2] sm:$0xff] %vm31, 0.0
    $region21: #{tpu_custom_call.1} parent=1 // pred_fallthru
      _
    %v33 = vld [vmem:[#allocation4] sm:$0xff]
    %v34 = vld [vmem:[%s1] sm:$0x1]
    %v35 = vld [vmem:[#allocation2] sm:$0xff]
    %v37 = vlaneseq
    %v38 = vshrl.u32 %v37, 7
    %v39 = vsub.s32 0, %v38
    %v40 = vrot.slane %v34, %v39
    %v42 = vmul.f32 %v33, %v40
    %vm43 = vcmask 261120
    %v44 = vsel %vm43, %v42, 0.0
    %45 = vadd.xlane.f32.xlu0 %v44
    %v46 = vpop.xlane.xlu0 %45
    %v47 = vadd.f32 %v35, %v46
    %vm48 = vcmask 7168
    %49 = vst.msk [vmem:[#allocation2] sm:$0xff] %vm48, %v47
    // Predicated region
    $region22: #{tpu_custom_call.1} parent=1 // pred_check
      %p50 = pneg %p27
    $region23: #{tpu_custom_call.1} parent=1 // pred_check_branch
      %52 = sbr.rel (%p50) target = $region25
    $region24: #{tpu_custom_call.1} parent=1 // pred_region
      %v53 = vld [vmem:[#allocation2] sm:$0xff]
      %s54 = sld [smem:[#allocation3]]
      %v55 = vstv %s54
      %v56 = vadd.f32 %v53, %v55
      %57 = vst.msk [vmem:[%s3] sm:$0xff] %vm48, %v56
    $region25: #{tpu_custom_call.1} parent=1 // pred_fallthru
      _
    // Predicated region
    $region26: #{tpu_custom_call.1} parent=1 // pred_check
      _
    $region27: #{tpu_custom_call.1} parent=1 // pred_check_branch
      %59 = sbr.rel (0) target = $region29
    $region28: #{tpu_custom_call.1} parent=1 // pred_region
      _
    $region29: #{tpu_custom_call.1} parent=1 // pred_fallthru
      _
    // Predicated region
    $region30: #{tpu_custom_call.1} parent=1 // pred_check
      _
    $region31: #{tpu_custom_call.1} parent=1 // pred_check_branch
      %61 = sbr.rel (0) target = $region33
    $region32: #{tpu_custom_call.1} parent=1 // pred_region
      _
    $region33: #{tpu_custom_call.1} parent=1 // pred_fallthru
      _
    %62 = vsyncpa [#allocation5], 1

</llo_original>
